<compile_context>
chip_gen: v6e
topology: v6e:2x2x1
jax: 0.10.0
libtpu: 0.0.40
codegen_flags: <defaults>
</compile_context>

<pallas_src>
import functools

import jax
import jax.numpy as jnp
from jax.experimental import pallas as pl
from jax.experimental.pallas import tpu as pltpu

EPS = 1e-5


# ---------------------------------------------------------------------------
# Kernels
# ---------------------------------------------------------------------------
def _norm_kernel(x_ref, w_ref, b_ref, y_ref, mean_ref, std_ref):
    """Fused stats + normalize + affine for one (Bb, T, C) slab (full T)."""
    x = x_ref[...].astype(jnp.float32)                      # (Bb, T, C), f32 stats
    mean = jnp.mean(x, axis=1, keepdims=True)               # (Bb, 1, C)
    d = x - mean
    var = jnp.mean(d * d, axis=1, keepdims=True)            # biased (unbiased=False)
    std = jnp.sqrt(var + EPS)

    w = w_ref[...].astype(jnp.float32)                      # (1, C)
    b = b_ref[...].astype(jnp.float32)
    scale = w * (1.0 / std)                                  # per (batch, channel) only
    shift = b - mean * scale
    y_ref[...] = (x * scale + shift).astype(y_ref.dtype)     # one FMA pass over tile
    mean_ref[...] = mean.astype(mean_ref.dtype)
    std_ref[...] = std.astype(std_ref.dtype)


def _stats_kernel(x_ref, mean_ref, std_ref, sum_sc, sumsq_sc, *, t_total, t_tile):
    """T-tiled statistics: accumulate sum / sum-of-squares (f32) over the T axis."""
    t = pl.program_id(1)

    @pl.when(t == 0)
    def _():
        sum_sc[...] = jnp.zeros_like(sum_sc)
        sumsq_sc[...] = jnp.zeros_like(sumsq_sc)

    x = x_ref[...].astype(jnp.float32)                       # (Bb, Tt, C)
    # Mask rows past the true sequence length (ragged last T block is padded
    # with unspecified values by Pallas).
    row = jax.lax.broadcasted_iota(jnp.int32, x.shape, 1)
    x = jnp.where(t * t_tile + row < t_total, x, 0.0)
    sum_sc[...] = sum_sc[...] + jnp.sum(x, axis=1, keepdims=True)
    sumsq_sc[...] = sumsq_sc[...] + jnp.sum(x * x, axis=1, keepdims=True)

    @pl.when(t == pl.num_programs(1) - 1)
    def _():
        inv_n = 1.0 / t_total
        mean = sum_sc[...] * inv_n
        var = jnp.maximum(sumsq_sc[...] * inv_n - mean * mean, 0.0)
        mean_ref[...] = mean.astype(mean_ref.dtype)
        std_ref[...] = jnp.sqrt(var + EPS).astype(std_ref.dtype)


def _apply_norm_kernel(x_ref, mean_ref, std_ref, w_ref, b_ref, y_ref):
    """T-tiled apply: y = ((x - mean)/std) * w + b, folded to one FMA pass."""
    x = x_ref[...].astype(jnp.float32)
    mean = mean_ref[...].astype(jnp.float32)
    std = std_ref[...].astype(jnp.float32)
    w = w_ref[...].astype(jnp.float32)
    b = b_ref[...].astype(jnp.float32)
    scale = w * (1.0 / std)
    shift = b - mean * scale
    y_ref[...] = (x * scale + shift).astype(y_ref.dtype)


def _denorm_kernel(x_ref, mean_ref, std_ref, w_ref, b_ref, y_ref):
    """Reference: ((x - b) / (w + eps^2)) * std + mean, folded to one FMA pass."""
    x = x_ref[...].astype(jnp.float32)
    mean = mean_ref[...].astype(jnp.float32)
    std = std_ref[...].astype(jnp.float32)
    w = w_ref[...].astype(jnp.float32)
    b = b_ref[...].astype(jnp.float32)
    scale = std * (1.0 / (w + EPS * EPS))
    shift = mean - b * scale
    y_ref[...] = (x * scale + shift).astype(y_ref.dtype)


# ---------------------------------------------------------------------------
# Generation-aware sizing helpers
# ---------------------------------------------------------------------------
@functools.lru_cache(maxsize=1)
def _vmem_capacity_bytes():
    try:
        return int(pltpu.get_tpu_info().vmem_capacity_bytes)
    except Exception:
        return 64 << 20               # conservative (v7x per-core VMEM)


def _vmem_limit_bytes():
    return int(min(_vmem_capacity_bytes() * 3 // 4, 112 << 20))


def _default_tile_elems(itemsize):
    """Element budget for one x tile, sized per TPU generation."""
    cap = _vmem_capacity_bytes()
    limit = _vmem_limit_bytes()
    # VMEM cost per x-tile element: double-buffered in + out (itemsize each)
    # plus ~12 B of in-kernel f32 temporaries (upcast, centered copy, result).
    per_elem = 4 * itemsize + 12
    budget = (limit * 7 // 10) // per_elem
    # keep the raw x tile near ~1/16 of physical VMEM (pipelining granularity):
    # 8 MiB on 128 MiB parts, 4 MiB on the 64 MiB v7x part.
    budget = min(budget, (cap // 16) // itemsize)
    return max(int(budget), 8 * 128)


def _pick_tiles(B, T, C, budget_elems):
    """Choose (Bb, Tt). Bb divides B; Tt == T unless a full slab is too big."""
    per_batch = T * C
    if per_batch <= budget_elems:
        # Whole-(T, C) slabs; biggest divisor of B fitting the budget while
        # keeping >= min(4, B) grid steps (2 per TensorCore on v7x megacore,
        # pipelining depth on single-core parts).
        min_steps = min(4, B)
        for d in range(B, 0, -1):
            if B % d == 0 and d * per_batch <= budget_elems and B // d >= min_steps:
                return d, T
        return 1, T
    # Long-sequence fallback: one batch element per block, lane dim stays the
    # full channel extent, sublane (T) tile a multiple of 8.
    tt = max(8, (budget_elems // C) // 8 * 8)
    if tt >= T:
        return 1, T
    # Prefer a divisor of T (no ragged last block).
    for d in range(tt, 7, -8):
        if T % d == 0:
            return 1, d
    # Ragged last block: stats kernel masks reads; OOB writes are discarded.
    return 1, tt


# ---------------------------------------------------------------------------
# Wrappers
# ---------------------------------------------------------------------------
def revin_norm(x, affine_weight, affine_bias, *, max_tile_elems=None):
    """mode='norm'. Returns (y, mean, stdev); mean/stdev are float32 (B,1,C)."""
    B, T, C = x.shape
    w2 = affine_weight.reshape(1, C)
    b2 = affine_bias.reshape(1, C)
    itemsize = jnp.dtype(x.dtype).itemsize
    budget = max_tile_elems if max_tile_elems is not None else _default_tile_elems(itemsize)
    Bb, Tt = _pick_tiles(B, T, C, budget)
    nb = B // Bb
    vmem_limit = _vmem_limit_bytes()

    if Tt == T:
        # Single fused pass: x read once, y written once.
        out_shapes = (
            jax.ShapeDtypeStruct((B, T, C), x.dtype),
            jax.ShapeDtypeStruct((B, 1, C), jnp.float32),
            jax.ShapeDtypeStruct((B, 1, C), jnp.float32),
        )
        grid_spec = pltpu.PrefetchScalarGridSpec(
            num_scalar_prefetch=0,
            grid=(nb,),
            in_specs=[
                pl.BlockSpec((Bb, T, C), lambda b: (b, 0, 0)),
                pl.BlockSpec((1, C), lambda b: (0, 0)),
                pl.BlockSpec((1, C), lambda b: (0, 0)),
            ],
            out_specs=[
                pl.BlockSpec((Bb, T, C), lambda b: (b, 0, 0)),
                pl.BlockSpec((Bb, 1, C), lambda b: (b, 0, 0)),
                pl.BlockSpec((Bb, 1, C), lambda b: (b, 0, 0)),
            ],
        )
        cost = pl.CostEstimate(
            flops=int(7 * B * T * C),
            transcendentals=int(B * C),
            bytes_accessed=int(2 * B * T * C * itemsize + 8 * B * C + 8 * C),
        )
        return pl.pallas_call(
            _norm_kernel,
            out_shape=out_shapes,
            grid_spec=grid_spec,
            compiler_params=pltpu.CompilerParams(
                dimension_semantics=("parallel",),
                vmem_limit_bytes=vmem_limit),
            cost_estimate=cost,
        )(x, w2, b2)

    # -------- long-sequence fallback: T tiled --------
    nt = pl.cdiv(T, Tt)

    # Pass 1: statistics (sum / sumsq accumulated in f32 VMEM scratch over T).
    stats = functools.partial(_stats_kernel, t_total=T, t_tile=Tt)
    mean, std = pl.pallas_call(
        stats,
        out_shape=(jax.ShapeDtypeStruct((B, 1, C), jnp.float32),
                   jax.ShapeDtypeStruct((B, 1, C), jnp.float32)),
        grid_spec=pltpu.PrefetchScalarGridSpec(
            num_scalar_prefetch=0,
            grid=(nb, nt),
            in_specs=[pl.BlockSpec((Bb, Tt, C), lambda b, t: (b, t, 0))],
            out_specs=[pl.BlockSpec((Bb, 1, C), lambda b, t: (b, 0, 0)),
                       pl.BlockSpec((Bb, 1, C), lambda b, t: (b, 0, 0))],
            scratch_shapes=[pltpu.VMEM((Bb, 1, C), jnp.float32),
                            pltpu.VMEM((Bb, 1, C), jnp.float32)],
        ),
        compiler_params=pltpu.CompilerParams(
            dimension_semantics=("parallel", "arbitrary"),
            vmem_limit_bytes=vmem_limit),
        cost_estimate=pl.CostEstimate(
            flops=int(4 * B * T * C),
            transcendentals=int(B * C),
            bytes_accessed=int(B * T * C * itemsize + 8 * B * C)),
    )(x)

    # Pass 2: folded scale/shift apply.
    y = pl.pallas_call(
        _apply_norm_kernel,
        out_shape=jax.ShapeDtypeStruct((B, T, C), x.dtype),
        grid_spec=pltpu.PrefetchScalarGridSpec(
            num_scalar_prefetch=0,
            grid=(nb, nt),
            in_specs=[
                pl.BlockSpec((Bb, Tt, C), lambda b, t: (b, t, 0)),
                pl.BlockSpec((Bb, 1, C), lambda b, t: (b, 0, 0)),
                pl.BlockSpec((Bb, 1, C), lambda b, t: (b, 0, 0)),
                pl.BlockSpec((1, C), lambda b, t: (0, 0)),
                pl.BlockSpec((1, C), lambda b, t: (0, 0)),
            ],
            out_specs=pl.BlockSpec((Bb, Tt, C), lambda b, t: (b, t, 0)),
        ),
        compiler_params=pltpu.CompilerParams(
            dimension_semantics=("parallel", "parallel"),
            vmem_limit_bytes=vmem_limit),
        cost_estimate=pl.CostEstimate(
            flops=int(2 * B * T * C),
            transcendentals=0,
            bytes_accessed=int(2 * B * T * C * itemsize + 8 * B * C)),
    )(x, mean, std, w2, b2)
    return y, mean, std


def revin_denorm(x, mean, stdev, affine_weight, affine_bias, *, max_tile_elems=None):
    """mode='denorm'. x/mean/stdev as produced by revin_norm; weight/bias (C,)."""
    B, T, C = x.shape
    w2 = affine_weight.reshape(1, C)
    b2 = affine_bias.reshape(1, C)
    meanr = mean.reshape(B, 1, C)
    stdr = stdev.reshape(B, 1, C)
    itemsize = jnp.dtype(x.dtype).itemsize
    budget = max_tile_elems if max_tile_elems is not None else _default_tile_elems(itemsize)
    Bb, Tt = _pick_tiles(B, T, C, budget)
    nb = B // Bb
    nt = pl.cdiv(T, Tt)

    grid_spec = pltpu.PrefetchScalarGridSpec(
        num_scalar_prefetch=0,
        grid=(nb, nt),
        in_specs=[
            pl.BlockSpec((Bb, Tt, C), lambda b, t: (b, t, 0)),
            pl.BlockSpec((Bb, 1, C), lambda b, t: (b, 0, 0)),
            pl.BlockSpec((Bb, 1, C), lambda b, t: (b, 0, 0)),
            pl.BlockSpec((1, C), lambda b, t: (0, 0)),
            pl.BlockSpec((1, C), lambda b, t: (0, 0)),
        ],
        out_specs=pl.BlockSpec((Bb, Tt, C), lambda b, t: (b, t, 0)),
    )
    cost = pl.CostEstimate(
        flops=int(2 * B * T * C),
        transcendentals=0,
        bytes_accessed=int(2 * B * T * C * itemsize + 8 * B * C + 8 * C))
    return pl.pallas_call(
        _denorm_kernel,
        out_shape=jax.ShapeDtypeStruct((B, T, C), x.dtype),
        grid_spec=grid_spec,
        compiler_params=pltpu.CompilerParams(
            dimension_semantics=("parallel", "parallel"),
            vmem_limit_bytes=_vmem_limit_bytes()),
        cost_estimate=cost,
    )(x, meanr, stdr, w2, b2)


# ---------------------------------------------------------------------------
# Pure-JAX reference (mirrors the PyTorch forward)
# ---------------------------------------------------------------------------
def _ref_norm(x, w, b):
    mean = jnp.mean(x, axis=1, keepdims=True)
    std = jnp.sqrt(jnp.var(x, axis=1, keepdims=True) + EPS)   # unbiased=False
    return (x - mean) / std * w + b, mean, std


def _ref_denorm(x, mean, std, w, b):
    return (x - b) / (w + EPS * EPS) * std + mean


# ---------------------------------------------------------------------------
# Self-test
# ---------------------------------------------------------------------------
if __name__ == "__main__":
    key = jax.random.PRNGKey(0)

    def run_case(name, B, T, C, dtype, max_tile_elems, tol_out, tol_stat, tol_rt):
        kx = jax.random.fold_in(key, B * 100000 + T * 1000 + C)
        x32 = jax.random.normal(kx, (B, T, C), dtype=jnp.float32) * 3.0 + 1.5
        w = 1.0 + 0.1 * jnp.arange(C, dtype=jnp.float32)       # non-trivial affine
        b = 0.05 * jnp.arange(C, dtype=jnp.float32) - 0.3
        x = x32.astype(dtype)
        xf = x.astype(jnp.float32)                              # what the kernels see

        y, mean, std = revin_norm(x, w, b, max_tile_elems=max_tile_elems)
        x_rec = revin_denorm(y, mean, std, w, b, max_tile_elems=max_tile_elems)
        jax.block_until_ready((y, mean, std, x_rec))

        assert y.dtype == x.dtype and y.shape == x.shape, name
        assert mean.dtype == jnp.float32 and std.dtype == jnp.float32, name
        assert mean.shape == (B, 1, C) and std.shape == (B, 1, C), name

        y_ref, mean_ref, std_ref = _ref_norm(xf, w, b)
        x_rec_ref = _ref_denorm(y.astype(jnp.float32), mean, std, w, b)

        yf = y.astype(jnp.float32)
        xrf = x_rec.astype(jnp.float32)
        assert jnp.allclose(yf, y_ref, atol=tol_out, rtol=tol_out), f"{name}: norm mismatch"
        assert jnp.allclose(mean, mean_ref, atol=tol_stat, rtol=tol_stat), f"{name}: mean mismatch"
        assert jnp.allclose(std, std_ref, atol=tol_stat, rtol=tol_stat), f"{name}: std mismatch"
        assert jnp.allclose(xrf, x_rec_ref, atol=tol_out, rtol=tol_out), f"{name}: denorm mismatch"
        assert jnp.allclose(xrf, xf, atol=tol_rt, rtol=tol_rt), f"{name}: round-trip mismatch"

    # 1) Default path: whole-(T, C) slabs, unpadded C (not a multiple of 128).
    run_case("dense_f32", B=4, T=16, C=20, dtype=jnp.float32,
             max_tile_elems=None, tol_out=1e-4, tol_stat=1e-4, tol_rt=1e-4)
    # 2) Long-sequence fallback, exercised by forcing a tiny tile budget:
    #    T-tiled stats accumulation + separate folded apply pass.
    run_case("t_tiled_f32", B=3, T=32, C=24, dtype=jnp.float32,
             max_tile_elems=300, tol_out=1e-4, tol_stat=1e-4, tol_rt=1e-4)
    # 3) bf16 activations; statistics still computed and returned in float32.
    run_case("dense_bf16", B=2, T=24, C=16, dtype=jnp.bfloat16,
             max_tile_elems=None, tol_out=2e-2, tol_stat=1e-3, tol_rt=5e-2)

    print("KERNEL_OK")
</pallas_src>

<mosaic_0001>
module attributes {stable_mosaic.version = 11 : i64} {
  func.func @_norm_kernel(%arg0: i32, %arg1: memref<1x16x20xf32, #tpu.memory_space<vmem>>, %arg2: memref<1x20xf32, #tpu.memory_space<vmem>>, %arg3: memref<1x20xf32, #tpu.memory_space<vmem>>, %arg4: memref<1x16x20xf32, #tpu.memory_space<vmem>>, %arg5: memref<1x1x20xf32, #tpu.memory_space<vmem>>, %arg6: memref<1x1x20xf32, #tpu.memory_space<vmem>>) attributes {dimension_semantics = [#tpu.dimension_semantics<parallel>], iteration_bounds = array<i64: 4>, scalar_prefetch = 0 : i64, scratch_operands = 0 : i64, tpu.core_type = #tpu.core_type<tc>, window_params = [{transform_indices = @transform_0, window_bounds = array<i64: 1, 16, 20>}, {pipeline_mode = #tpu.pipeline_mode<synchronous>, transform_indices = @transform_1, window_bounds = array<i64: 1, 20>}, {pipeline_mode = #tpu.pipeline_mode<synchronous>, transform_indices = @transform_2, window_bounds = array<i64: 1, 20>}, {transform_indices = @transform_3, window_bounds = array<i64: 1, 16, 20>}, {transform_indices = @transform_4, window_bounds = array<i64: 1, 1, 20>}, {transform_indices = @transform_5, window_bounds = array<i64: 1, 1, 20>}]} {
    %c0 = arith.constant 0 : index
    %c0_0 = arith.constant 0 : index
    %c0_1 = arith.constant 0 : index
    %0 = vector.load %arg1[%c0, %c0_0, %c0_1] : memref<1x16x20xf32, #tpu.memory_space<vmem>>, vector<1x16x20xf32>
    %cst = arith.constant dense<0.000000e+00> : vector<1x20xf32>
    %1 = vector.multi_reduction <add>, %0, %cst [1] : vector<1x16x20xf32> to vector<1x20xf32>
    %2 = vector.shape_cast %1 : vector<1x20xf32> to vector<1x1x20xf32>
    %cst_2 = arith.constant 1.600000e+01 : f32
    %3 = vector.broadcast %cst_2 : f32 to vector<1x1x20xf32>
    %4 = arith.divf %2, %3 : vector<1x1x20xf32>
    %5 = vector.broadcast %4 : vector<1x1x20xf32> to vector<1x16x20xf32>
    %6 = arith.subf %0, %5 : vector<1x16x20xf32>
    %7 = arith.mulf %6, %6 : vector<1x16x20xf32>
    %cst_3 = arith.constant dense<0.000000e+00> : vector<1x20xf32>
    %8 = vector.multi_reduction <add>, %7, %cst_3 [1] : vector<1x16x20xf32> to vector<1x20xf32>
    %9 = vector.shape_cast %8 : vector<1x20xf32> to vector<1x1x20xf32>
    %cst_4 = arith.constant 1.600000e+01 : f32
    %10 = vector.broadcast %cst_4 : f32 to vector<1x1x20xf32>
    %11 = arith.divf %9, %10 : vector<1x1x20xf32>
    %cst_5 = arith.constant 9.99999974E-6 : f32
    %12 = vector.broadcast %cst_5 : f32 to vector<1x1x20xf32>
    %13 = arith.addf %11, %12 : vector<1x1x20xf32>
    %14 = math.sqrt %13 : vector<1x1x20xf32>
    %c0_6 = arith.constant 0 : index
    %c0_7 = arith.constant 0 : index
    %15 = vector.load %arg2[%c0_6, %c0_7] : memref<1x20xf32, #tpu.memory_space<vmem>>, vector<1x20xf32>
    %c0_8 = arith.constant 0 : index
    %c0_9 = arith.constant 0 : index
    %16 = vector.load %arg3[%c0_8, %c0_9] : memref<1x20xf32, #tpu.memory_space<vmem>>, vector<1x20xf32>
    %cst_10 = arith.constant 1.000000e+00 : f32
    %17 = vector.broadcast %cst_10 : f32 to vector<1x1x20xf32>
    %18 = arith.divf %17, %14 : vector<1x1x20xf32>
    %19 = vector.shape_cast %15 : vector<1x20xf32> to vector<1x1x20xf32>
    %20 = arith.mulf %19, %18 : vector<1x1x20xf32>
    %21 = arith.mulf %4, %20 : vector<1x1x20xf32>
    %22 = vector.shape_cast %16 : vector<1x20xf32> to vector<1x1x20xf32>
    %23 = arith.subf %22, %21 : vector<1x1x20xf32>
    %24 = vector.broadcast %20 : vector<1x1x20xf32> to vector<1x16x20xf32>
    %25 = arith.mulf %0, %24 : vector<1x16x20xf32>
    %26 = vector.broadcast %23 : vector<1x1x20xf32> to vector<1x16x20xf32>
    %27 = arith.addf %25, %26 : vector<1x16x20xf32>
    %c0_11 = arith.constant 0 : index
    %c0_12 = arith.constant 0 : index
    %c0_13 = arith.constant 0 : index
    %28 = vector.load %arg4[%c0_11, %c0_12, %c0_13] : memref<1x16x20xf32, #tpu.memory_space<vmem>>, vector<1x16x20xf32>
    tpu.vector_store %arg4[%c0_11, %c0_12, %c0_13], %27 {strides = array<i32>} : memref<1x16x20xf32, #tpu.memory_space<vmem>>, vector<1x16x20xf32>,
    %c0_14 = arith.constant 0 : index
    %c0_15 = arith.constant 0 : index
    %c0_16 = arith.constant 0 : index
    %29 = vector.load %arg5[%c0_14, %c0_15, %c0_16] : memref<1x1x20xf32, #tpu.memory_space<vmem>>, vector<1x1x20xf32>
    tpu.vector_store %arg5[%c0_14, %c0_15, %c0_16], %4 {strides = array<i32>} : memref<1x1x20xf32, #tpu.memory_space<vmem>>, vector<1x1x20xf32>,
    %c0_17 = arith.constant 0 : index
    %c0_18 = arith.constant 0 : index
    %c0_19 = arith.constant 0 : index
    %30 = vector.load %arg6[%c0_17, %c0_18, %c0_19] : memref<1x1x20xf32, #tpu.memory_space<vmem>>, vector<1x1x20xf32>
    tpu.vector_store %arg6[%c0_17, %c0_18, %c0_19], %14 {strides = array<i32>} : memref<1x1x20xf32, #tpu.memory_space<vmem>>, vector<1x1x20xf32>,
    return
  }
  func.func @transform_0(%arg0: i32) -> (i32, i32, i32) {
    %c0_i32 = arith.constant 0 : i32
    %c0_i32_0 = arith.constant 0 : i32
    %c0_i32_1 = arith.constant 0 : i32
    return %arg0, %c0_i32, %c0_i32_0 : i32, i32, i32
  }
  func.func @transform_1(%arg0: i32) -> (i32, i32) {
    %c0_i32 = arith.constant 0 : i32
    %c0_i32_0 = arith.constant 0 : i32
    %c0_i32_1 = arith.constant 0 : i32
    return %c0_i32, %c0_i32_0 : i32, i32
  }
  func.func @transform_2(%arg0: i32) -> (i32, i32) {
    %c0_i32 = arith.constant 0 : i32
    %c0_i32_0 = arith.constant 0 : i32
    %c0_i32_1 = arith.constant 0 : i32
    return %c0_i32, %c0_i32_0 : i32, i32
  }
  func.func @transform_3(%arg0: i32) -> (i32, i32, i32) {
    %c0_i32 = arith.constant 0 : i32
    %c0_i32_0 = arith.constant 0 : i32
    %c0_i32_1 = arith.constant 0 : i32
    return %arg0, %c0_i32, %c0_i32_0 : i32, i32, i32
  }
  func.func @transform_4(%arg0: i32) -> (i32, i32, i32) {
    %c0_i32 = arith.constant 0 : i32
    %c0_i32_0 = arith.constant 0 : i32
    %c0_i32_1 = arith.constant 0 : i32
    return %arg0, %c0_i32, %c0_i32_0 : i32, i32, i32
  }
  func.func @transform_5(%arg0: i32) -> (i32, i32, i32) {
    %c0_i32 = arith.constant 0 : i32
    %c0_i32_0 = arith.constant 0 : i32
    %c0_i32_1 = arith.constant 0 : i32
    return %arg0, %c0_i32, %c0_i32_0 : i32, i32, i32
  }
}

</mosaic_0001>

<llo_original>
// kernel: tpu_custom_call.1
$region0: #{tpu_custom_call.1}
  #allocation0 [shape = 'u32[]', space=smem, size = 0x4, offset = 0x4, fixed_abs, tag = 'smem constant byte address 0x4 - core index']
  #allocation1 [shape = 'u32[144,128]{1,0:T(1,128)}', space=vmem, size = 0x12000, scoped, tag = 'internal scratch']
  %s0 = inlined_call_operand.hbm [shape: f32[4,16,20], index: 0, kind: input, shape index: {}]
  %s1 = inlined_call_operand.vmem [shape: f32[1,20], index: 1, kind: input, shape index: {}]
  %s2 = inlined_call_operand.vmem [shape: f32[1,20], index: 2, kind: input, shape index: {}]
  %s3 = inlined_call_operand.hbm [shape: f32[4,16,20], index: 3, kind: output, shape index: {0}]
  %s4 = inlined_call_operand.hbm [shape: f32[4,1,20], index: 4, kind: output, shape index: {1}]
  %s5 = inlined_call_operand.hbm [shape: f32[4,1,20], index: 5, kind: output, shape index: {2}]
  %6 = xla_tuple %s3, %s4, %s5
  %s7 = sld [smem:[#allocation0]]
  $region65: #{tpu_custom_call.1} parent=0
    _
  %s9 = ssub.s32 1, %s7
  %s10 = scalar_select 0, %s9, %s7
  $region1: #{tpu_custom_call.1} parent=0
    #allocation2 [shape = 'u8[16384]{0}', space=vmem, size = 0x4000, scoped, tag = 'input window, operand 0']
    #allocation3 [shape = 's32[2]{0}', space=sflag, size = 0x8, scoped, tag = 'scoped memory for tpu_custom_call.1']
    #allocation4 [shape = 's32[2]{0}', space=sflag, size = 0x8, scoped, tag = 'scoped memory for tpu_custom_call.1']
    #allocation5 [shape = 'u8[16384]{0}', space=vmem, size = 0x4000, scoped, tag = 'output window, operand 0']
    #allocation6 [shape = 'u8[1024]{0}', space=vmem, size = 0x400, scoped, tag = 'output window, operand 1']
    #allocation7 [shape = 's32[2]{0}', space=sflag, size = 0x8, scoped, tag = 'scoped memory for tpu_custom_call.1']
    #allocation8 [shape = 'u8[1024]{0}', space=vmem, size = 0x400, scoped, tag = 'output window, operand 2']
    %11 = vsyncpa [#allocation3], 0
    %s12 = scalar_lea.sflag [#allocation3], 1
    %13 = vsyncpa %s12, 0
    %14 = vsyncpa [#allocation4], 0
    %s15 = scalar_lea.sflag [#allocation4], 1
    %16 = vsyncpa %s15, 0
    %17 = vsyncpa [#allocation7], 0
    %s18 = scalar_lea.sflag [#allocation7], 1
    %19 = vsyncpa %s18, 0
    loop: start=0, step=1, limit=6
    $region2: #{tpu_custom_call.1} parent=1 // loop_pre_header
      _
    $region3: #{tpu_custom_call.1} parent=1 // loop_header
      %s21 = sphi 0, %s25
      %p22 = scmp.ge.s32.totalorder %s21, 6
      %s31 = sphi 0, %s33
      %s34 = sphi 0, %s31
      %s35 = sphi 0, %s34
      %s51 = sphi 0, %s35
      %s55 = sphi 0, %s55
      %s57 = sphi 0, %s55
      %s58 = sphi 0, %s57
      %s72 = sphi 0, %s58
      %s76 = sphi 0, %s76
      %s78 = sphi 0, %s76
      %s79 = sphi 0, %s78
      %s93 = sphi 0, %s79
      %s99 = sphi 0, %s101
      %s102 = sphi 0, %s99
      %s103 = sphi 0, %s102
      %s119 = sphi 0, %s103
      %s125 = sphi 0, %s127
      %s128 = sphi 0, %s125
      %s129 = sphi 0, %s128
      %s145 = sphi 0, %s129
      %s151 = sphi 0, %s153
      %s154 = sphi 0, %s151
      %s155 = sphi 0, %s154
      %s171 = sphi 0, %s155
    $region4: #{tpu_custom_call.1} parent=1 // loop_header_branch
      %24 = sbr.rel (%p22) target = $region8
    $region5: #{tpu_custom_call.1} parent=1 // loop_body
      %s26 = ssub.s32 %s21, 1
      %s27 = ssub.s32 %s21, 2
      %s28 = sadd.s32 %s21, 1
      %s29 = ssub.s32 %s21, %s28
      %p30 = scmp.eq.s32.totalorder %s29, 0
      %s32 = sadd.s32 %s31, 1
      %s33 = scalar_select %p30, %s31, %s32
      %p36 = pneg %p30
      %p37 = scmp.eq.s32.totalorder %s21, 3
      %p38 = por %p36, %p37
      %p39 = scmp.ne.s32.totalorder %s31, %s34
      %p40 = scmp.eq.s32.totalorder %s21, 0
      %p41 = por %p39, %p40
      %p42 = scmp.ne.s32.totalorder %s31, %s34
      %p43 = scmp.eq.s32.totalorder %s26, 3
      %p44 = por %p42, %p43
      %p45 = scmp.ne.s32.totalorder %s34, %s35
      %p46 = scmp.eq.s32.totalorder %s26, 0
      %p47 = por %p45, %p46
      %p48 = scmp.ne.s32.totalorder %s34, %s35
      %p49 = scmp.eq.s32.totalorder %s27, 3
      %p50 = por %p48, %p49
      %p52 = scmp.ne.s32.totalorder %s35, %s51
      %p53 = scmp.eq.s32.totalorder %s27, 0
      %p54 = por %p52, %p53
      %s56 = sadd.s32 %s55, 1
      %p59 = scmp.eq.s32.totalorder %s21, 3
      %p60 = scmp.ne.s32.totalorder %s55, %s57
      %p61 = scmp.eq.s32.totalorder %s21, 0
      %p62 = por %p60, %p61
      %p63 = scmp.ne.s32.totalorder %s55, %s57
      %p64 = scmp.eq.s32.totalorder %s26, 3
      %p65 = por %p63, %p64
      %p66 = scmp.ne.s32.totalorder %s57, %s58
      %p67 = scmp.eq.s32.totalorder %s26, 0
      %p68 = por %p66, %p67
      %p69 = scmp.ne.s32.totalorder %s57, %s58
      %p70 = scmp.eq.s32.totalorder %s27, 3
      %p71 = por %p69, %p70
      %p73 = scmp.ne.s32.totalorder %s58, %s72
      %p74 = scmp.eq.s32.totalorder %s27, 0
      %p75 = por %p73, %p74
      %s77 = sadd.s32 %s76, 1
      %p80 = scmp.eq.s32.totalorder %s21, 3
      %p81 = scmp.ne.s32.totalorder %s76, %s78
      %p82 = scmp.eq.s32.totalorder %s21, 0
      %p83 = por %p81, %p82
      %p84 = scmp.ne.s32.totalorder %s76, %s78
      %p85 = scmp.eq.s32.totalorder %s26, 3
      %p86 = por %p84, %p85
      %p87 = scmp.ne.s32.totalorder %s78, %s79
      %p88 = scmp.eq.s32.totalorder %s26, 0
      %p89 = por %p87, %p88
      %p90 = scmp.ne.s32.totalorder %s78, %s79
      %p91 = scmp.eq.s32.totalorder %s27, 3
      %p92 = por %p90, %p91
      %p94 = scmp.ne.s32.totalorder %s79, %s93
      %p95 = scmp.eq.s32.totalorder %s27, 0
      %p96 = por %p94, %p95
      %s97 = ssub.s32 %s21, %s28
      %p98 = scmp.eq.s32.totalorder %s97, 0
      %s100 = sadd.s32 %s99, 1
      %s101 = scalar_select %p98, %s99, %s100
      %p104 = pneg %p98
      %p105 = scmp.eq.s32.totalorder %s21, 3
      %p106 = por %p104, %p105
      %p107 = scmp.ne.s32.totalorder %s99, %s102
      %p108 = scmp.eq.s32.totalorder %s21, 0
      %p109 = por %p107, %p108
      %p110 = scmp.ne.s32.totalorder %s99, %s102
      %p111 = scmp.eq.s32.totalorder %s26, 3
      %p112 = por %p110, %p111
      %p113 = scmp.ne.s32.totalorder %s102, %s103
      %p114 = scmp.eq.s32.totalorder %s26, 0
      %p115 = por %p113, %p114
      %p116 = scmp.ne.s32.totalorder %s102, %s103
      %p117 = scmp.eq.s32.totalorder %s27, 3
      %p118 = por %p116, %p117
      %p120 = scmp.ne.s32.totalorder %s103, %s119
      %p121 = scmp.eq.s32.totalorder %s27, 0
      %p122 = por %p120, %p121
      %s123 = ssub.s32 %s21, %s28
      %p124 = scmp.eq.s32.totalorder %s123, 0
      %s126 = sadd.s32 %s125, 1
      %s127 = scalar_select %p124, %s125, %s126
      %p130 = pneg %p124
      %p131 = scmp.eq.s32.totalorder %s21, 3
      %p132 = por %p130, %p131
      %p133 = scmp.ne.s32.totalorder %s125, %s128
      %p134 = scmp.eq.s32.totalorder %s21, 0
      %p135 = por %p133, %p134
      %p136 = scmp.ne.s32.totalorder %s125, %s128
      %p137 = scmp.eq.s32.totalorder %s26, 3
      %p138 = por %p136, %p137
      %p139 = scmp.ne.s32.totalorder %s128, %s129
      %p140 = scmp.eq.s32.totalorder %s26, 0
      %p141 = por %p139, %p140
      %p142 = scmp.ne.s32.totalorder %s128, %s129
      %p143 = scmp.eq.s32.totalorder %s27, 3
      %p144 = por %p142, %p143
      %p146 = scmp.ne.s32.totalorder %s129, %s145
      %p147 = scmp.eq.s32.totalorder %s27, 0
      %p148 = por %p146, %p147
      %s149 = ssub.s32 %s21, %s28
      %p150 = scmp.eq.s32.totalorder %s149, 0
      %s152 = sadd.s32 %s151, 1
      %s153 = scalar_select %p150, %s151, %s152
      %p156 = pneg %p150
      %p157 = scmp.eq.s32.totalorder %s21, 3
      %p158 = por %p156, %p157
      %p159 = scmp.ne.s32.totalorder %s151, %s154
      %p160 = scmp.eq.s32.totalorder %s21, 0
      %p161 = por %p159, %p160
      %p162 = scmp.ne.s32.totalorder %s151, %s154
      %p163 = scmp.eq.s32.totalorder %s26, 3
      %p164 = por %p162, %p163
      %p165 = scmp.ne.s32.totalorder %s154, %s155
      %p166 = scmp.eq.s32.totalorder %s26, 0
      %p167 = por %p165, %p166
      %p168 = scmp.ne.s32.totalorder %s154, %s155
      %p169 = scmp.eq.s32.totalorder %s27, 3
      %p170 = por %p168, %p169
      %p172 = scmp.ne.s32.totalorder %s155, %s171
      %p173 = scmp.eq.s32.totalorder %s27, 0
      %p174 = por %p172, %p173
      %p175 = scmp.le.s32.totalorder 1, %s21
      %p176 = scmp.lt.s32.totalorder %s21, 5
      %p177 = pnand %p175, %p176
      %p178 = pneg %p177
      // Predicated region
      $region9: #{tpu_custom_call.1} parent=5 // pred_check
        _
      $region10: #{tpu_custom_call.1} parent=5 // pred_check_branch
        %180 = sbr.rel (%p177) target = $region12
      $region11: #{tpu_custom_call.1} parent=5 // pred_region
        %s181 = ssub.s32 %s21, 1
        // Predicated region
        $region13: #{tpu_custom_call.1} parent=11 // pred_check
          %p182 = pneg %p68
        $region14: #{tpu_custom_call.1} parent=11 // pred_check_branch
          %184 = sbr.rel (%p182) target = $region16
        $region15: #{tpu_custom_call.1} parent=11 // pred_region
          _
        $region16: #{tpu_custom_call.1} parent=11 // pred_fallthru
          _
        // Predicated region
        $region17: #{tpu_custom_call.1} parent=11 // pred_check
          %p185 = pneg %p89
        $region18: #{tpu_custom_call.1} parent=11 // pred_check_branch
          %187 = sbr.rel (%p185) target = $region20
        $region19: #{tpu_custom_call.1} parent=11 // pred_region
          _
        $region20: #{tpu_custom_call.1} parent=11 // pred_fallthru
          _
      $region12: #{tpu_custom_call.1} parent=5 // pred_fallthru
        _
      %p188 = scmp.lt.s32.totalorder %s21, 4
      // Predicated region
      $region21: #{tpu_custom_call.1} parent=5 // pred_check
        %p189 = pneg %p188
      $region22: #{tpu_custom_call.1} parent=5 // pred_check_branch
        %191 = sbr.rel (%p189) target = $region24
      $region23: #{tpu_custom_call.1} parent=5 // pred_region
        // Predicated region
        $region25: #{tpu_custom_call.1} parent=23 // pred_check
          %p192 = pneg %p41
        $region26: #{tpu_custom_call.1} parent=23 // pred_check_branch
          %194 = sbr.rel (%p192) target = $region28
        $region27: #{tpu_custom_call.1} parent=23 // pred_region
          %s195 = sand.u32 %s31, 1
          %s196 = scalar_lea.sflag [#allocation3], %s195
          %s197 = sand.u32 %s31, 1
          %s198 = smul.addr %s197, 16
          %s199 = scalar_lea.vmem [#allocation2], %s198
          %s201 = ssub.s32 256, 256
          %202 = vsyncadd %s196, %s201
          %s203 = smul.addr %s21, 2
          %s204 = smul.addr %s203, 128
          %s205 = scalar_lea.hbm %s0, %s204
          %s206 = sshll.u32 %s199, 4
          %s207 = int_to_ptr.vmem [resolvable:$true] %s206
          %212 = dma.hbm_to_vmem [thread:$0]  %s205, 256, %s207, %s196, 128, 128, 8
        $region28: #{tpu_custom_call.1} parent=23 // pred_fallthru
          _
      $region24: #{tpu_custom_call.1} parent=5 // pred_fallthru
        _
      %p213 = scmp.le.s32.totalorder 1, %s21
      %p214 = scmp.lt.s32.totalorder %s21, 5
      %p215 = pnand %p213, %p214
      %p216 = pneg %p215
      // Predicated region
      $region29: #{tpu_custom_call.1} parent=5 // pred_check
        _
      $region30: #{tpu_custom_call.1} parent=5 // pred_check_branch
        %218 = sbr.rel (%p215) target = $region32
      $region31: #{tpu_custom_call.1} parent=5 // pred_region
        %s219 = ssub.s32 %s21, 1
        %s220 = sand.u32 %s34, 1
        %s221 = scalar_lea.sflag [#allocation3], %s220
        %s222 = sand.u32 %s34, 1
        %s223 = smul.addr %s222, 16
        %s224 = scalar_lea.vmem [#allocation2], %s223
        // Predicated region
        $region33: #{tpu_custom_call.1} parent=31 // pred_check
          %p225 = pneg %p47
        $region34: #{tpu_custom_call.1} parent=31 // pred_check_branch
          %227 = sbr.rel (%p225) target = $region36
        $region35: #{tpu_custom_call.1} parent=31 // pred_region
          %228 = dma.done %s221, 256
        $region36: #{tpu_custom_call.1} parent=31 // pred_fallthru
          _
        %s229 = sand.u32 %s34, 1
        %s230 = scalar_lea.sflag [#allocation3], %s229
        %s231 = sand.u32 %s34, 1
        %s232 = smul.addr %s231, 16
        %s233 = scalar_lea.vmem [#allocation2], %s232
        %p234 = pneg %p47
        %p235 = pneg %p44
        %p236 = pneg %p68
        %p237 = pneg %p65
        %p238 = pneg %p89
        %p239 = pneg %p86
        %p240 = pneg %p115
        %p241 = pneg %p112
        %s242 = sand.u32 %s102, 1
        %s243 = scalar_lea.sflag [#allocation4], %s242
        %s244 = sand.u32 %s102, 1
        %s245 = smul.addr %s244, 16
        %s246 = scalar_lea.vmem [#allocation5], %s245
        %p247 = pneg %p141
        %p248 = pneg %p138
        %s249 = sand.u32 %s26, 1
        %s250 = scalar_lea.sflag [#allocation7], %s249
        %s251 = sand.u32 %s128, 1
        %s252 = scalar_lea.vmem [#allocation6], %s251
        %p253 = pneg %p167
        %p254 = pneg %p164
        %s255 = sand.u32 %s26, 1
        %s256 = scalar_lea.sflag [#allocation7], %s255
        %s257 = sand.u32 %s154, 1
        %s258 = scalar_lea.vmem [#allocation8], %s257
        %v259 = vld [vmem:[%s224] sm:$0xff]
        %v260 = vld [vmem:[%s224 + $0x8] sm:$0xff]
        %vm261 = vcmask 162816
        %v262 = vsel %vm261, %v259, 0.0
        %v263 = vsel %vm261, %v260, 0.0
        %v264 = vadd.f32 %v262, %v263
        %v265 = vrot.slane %v264, 4
        %v266 = vadd.f32 %v264, %v265
        %v267 = vrot.slane %v266, 2
        %v268 = vadd.f32 %v266, %v267
        %v269 = vrot.slane %v268, 1
        %v270 = vadd.f32 %v268, %v269
        %v271 = vrcp.pop 16.0
        %v272 = vmul.f32 %v270, %v271
        %v273 = vsub.f32 %v259, %v272
        %v274 = vsub.f32 %v260, %v272
        %v275 = vmul.f32 %v273, %v273
        %v276 = vmul.f32 %v274, %v274
        %v277 = vsel %vm261, %v275, 0.0
        %v278 = vsel %vm261, %v276, 0.0
        %v279 = vadd.f32 %v277, %v278
        %v280 = vrot.slane %v279, 4
        %v281 = vadd.f32 %v279, %v280
        %v282 = vrot.slane %v281, 2
        %v283 = vadd.f32 %v281, %v282
        %v284 = vrot.slane %v283, 1
        %v285 = vadd.f32 %v283, %v284
        %v286 = vmul.f32 %v285, %v271
        %v287 = vadd.f32 %v286, 1e-05
        %v288 = vrsqrt.pop %v287
        %v289 = vmul.f32 %v287, %v288
        %vm290 = vcmp.eq.f32.partialorder %v287, inf
        %v291 = vsel %vm290, %v287, %v289
        %vm292 = vcmp.eq.f32.partialorder %v287, 0.0
        %v293 = vand.u32 %v287, 2147483648
        %v294 = vsel %vm292, %v293, %v291
        %v295 = vld [vmem:[%s1] sm:$0x1]
        %v296 = vld [vmem:[%s2] sm:$0x1]
        %v297 = vrcp.pop %v294
        %v298 = vmul.f32 1.0, %v297
        %v299 = vmul.f32 %v295, %v298
        %v300 = vmul.f32 %v272, %v299
        %v301 = vsub.f32 %v296, %v300
        %v303 = vlaneseq
        %v304 = vshrl.u32 %v303, 7
        %v305 = vsub.s32 0, %v304
        %v306 = vrot.slane %v299, %v305
        %v308 = vmul.f32 %v259, %v306
        %v309 = vmul.f32 %v260, %v306
        %v311 = vlaneseq
        %v312 = vshrl.u32 %v311, 7
        %v313 = vsub.s32 0, %v312
        %v314 = vrot.slane %v301, %v313
        %v316 = vadd.f32 %v308, %v314
        %v317 = vadd.f32 %v309, %v314
        %318 = vst.msk [vmem:[%s246] sm:$0xff] %vm261, %v316
        %319 = vst.msk [vmem:[%s246 + $0x8] sm:$0xff] %vm261, %v317
        %vm320 = vcmask 155648
        %321 = vst.msk [vmem:[%s252] sm:$0x1] %vm320, %v272
        %322 = vst.msk [vmem:[%s258] sm:$0x1] %vm320, %v294
        %s323 = sand.u32 %s102, 1
        %s324 = scalar_lea.sflag [#allocation4], %s323
        %s325 = sand.u32 %s102, 1
        %s326 = smul.addr %s325, 16
        %s327 = scalar_lea.vmem [#allocation5], %s326
        %s328 = sand.u32 %s26, 1
        %s329 = scalar_lea.sflag [#allocation7], %s328
        %s330 = sand.u32 %s128, 1
        %s331 = scalar_lea.vmem [#allocation6], %s330
        %s332 = sand.u32 %s26, 1
        %s333 = scalar_lea.sflag [#allocation7], %s332
        %s334 = sand.u32 %s154, 1
        %s335 = scalar_lea.vmem [#allocation8], %s334
        // Predicated region
        $region37: #{tpu_custom_call.1} parent=31 // pred_check
          %p336 = pneg %p112
        $region38: #{tpu_custom_call.1} parent=31 // pred_check_branch
          %338 = sbr.rel (%p336) target = $region40
        $region39: #{tpu_custom_call.1} parent=31 // pred_region
          %s340 = ssub.s32 256, 256
          %341 = vsyncadd %s324, %s340
          %s342 = smul.addr %s26, 2
          %s343 = smul.addr %s342, 128
          %s344 = scalar_lea.hbm %s3, %s343
          %s345 = sshll.u32 %s327, 4
          %s346 = int_to_ptr.vmem [resolvable:$true] %s345
          %351 = dma.vmem_to_hbm [thread:$0]  %s346, 256, %s344, %s324, 128, 128, 8
        $region40: #{tpu_custom_call.1} parent=31 // pred_fallthru
          _
        // Predicated region
        $region41: #{tpu_custom_call.1} parent=31 // pred_check
          %p352 = pneg %p138
        $region42: #{tpu_custom_call.1} parent=31 // pred_check_branch
          %354 = sbr.rel (%p352) target = $region44
        $region43: #{tpu_custom_call.1} parent=31 // pred_region
          %s356 = ssub.s32 16, 16
          %357 = vsyncadd %s329, %s356
          %s358 = smul.addr %s26, 16
          %s359 = scalar_lea.hbm %s4, %s358
          %s361 = sshll.u32 %s331, 4
          %s362 = int_to_ptr.vmem [resolvable:$true] %s361
          %364 = dma.vmem_to_hbm [thread:$0]  %s362, 16, %s359, %s329
        $region44: #{tpu_custom_call.1} parent=31 // pred_fallthru
          _
        // Predicated region
        $region45: #{tpu_custom_call.1} parent=31 // pred_check
          %p365 = pneg %p164
        $region46: #{tpu_custom_call.1} parent=31 // pred_check_branch
          %367 = sbr.rel (%p365) target = $region48
        $region47: #{tpu_custom_call.1} parent=31 // pred_region
          %s369 = ssub.s32 16, 16
          %370 = vsyncadd %s333, %s369
          %s371 = smul.addr %s26, 16
          %s372 = scalar_lea.hbm %s5, %s371
          %s374 = sshll.u32 %s335, 4
          %s375 = int_to_ptr.vmem [resolvable:$true] %s374
          %377 = dma.vmem_to_hbm [thread:$0]  %s375, 16, %s372, %s333
        $region48: #{tpu_custom_call.1} parent=31 // pred_fallthru
          _
      $region32: #{tpu_custom_call.1} parent=5 // pred_fallthru
        _
      %p378 = scmp.le.s32.totalorder 2, %s21
      // Predicated region
      $region49: #{tpu_custom_call.1} parent=5 // pred_check
        %p379 = pneg %p378
      $region50: #{tpu_custom_call.1} parent=5 // pred_check_branch
        %381 = sbr.rel (%p379) target = $region52
      $region51: #{tpu_custom_call.1} parent=5 // pred_region
        %s382 = ssub.s32 %s21, 2
        // Predicated region
        $region53: #{tpu_custom_call.1} parent=51 // pred_check
          %p383 = pneg %p118
        $region54: #{tpu_custom_call.1} parent=51 // pred_check_branch
          %385 = sbr.rel (%p383) target = $region56
        $region55: #{tpu_custom_call.1} parent=51 // pred_region
          %s386 = sand.u32 %s103, 1
          %s387 = scalar_lea.sflag [#allocation4], %s386
          %s388 = sand.u32 %s103, 1
          %s389 = smul.addr %s388, 16
          %s390 = scalar_lea.vmem [#allocation5], %s389
          %391 = dma.done %s387, 256
        $region56: #{tpu_custom_call.1} parent=51 // pred_fallthru
          _
        // Predicated region
        $region57: #{tpu_custom_call.1} parent=51 // pred_check
          %p392 = pneg %p144
        $region58: #{tpu_custom_call.1} parent=51 // pred_check_branch
          %394 = sbr.rel (%p392) target = $region60
        $region59: #{tpu_custom_call.1} parent=51 // pred_region
          %s395 = sand.u32 %s27, 1
          %s396 = scalar_lea.sflag [#allocation7], %s395
          %s397 = sand.u32 %s129, 1
          %s398 = scalar_lea.vmem [#allocation6], %s397
          %399 = dma.done %s396, 16
        $region60: #{tpu_custom_call.1} parent=51 // pred_fallthru
          _
        // Predicated region
        $region61: #{tpu_custom_call.1} parent=51 // pred_check
          %p400 = pneg %p170
        $region62: #{tpu_custom_call.1} parent=51 // pred_check_branch
          %402 = sbr.rel (%p400) target = $region64
        $region63: #{tpu_custom_call.1} parent=51 // pred_region
          %s403 = sand.u32 %s27, 1
          %s404 = scalar_lea.sflag [#allocation7], %s403
          %s405 = sand.u32 %s155, 1
          %s406 = scalar_lea.vmem [#allocation8], %s405
          %407 = dma.done %s404, 16
        $region64: #{tpu_custom_call.1} parent=51 // pred_fallthru
          _
      $region52: #{tpu_custom_call.1} parent=5 // pred_fallthru
        _
    $region6: #{tpu_custom_call.1} parent=1 // loop_footer
      %s25 = sadd.s32 1, %s21
    $region7: #{tpu_custom_call.1} parent=1 // loop_footer_branch
      %20 = sbr.rel target = $region3
    $region8: #{tpu_custom_call.1} parent=1 // loop_exit
      _
    %408 = vsyncpa [#allocation3], 1
    %s409 = scalar_lea.sflag [#allocation3], 1
    %410 = vsyncpa %s409, 1
    %411 = vsyncpa [#allocation4], 1
    %s412 = scalar_lea.sflag [#allocation4], 1
    %413 = vsyncpa %s412, 1
    %414 = vsyncpa [#allocation7], 1
    %s415 = scalar_lea.sflag [#allocation7], 1
    %416 = vsyncpa %s415, 1

</llo_original>
